<compile_context>
chip_gen: v7x
topology: tpu7x:2x2x1
jax: 0.10.0
libtpu: 0.0.40
codegen_flags: <defaults>
</compile_context>

<pallas_src>
import math
import functools

import jax
import jax.numpy as jnp
from jax.experimental import pallas as pl
from jax.experimental.pallas import tpu as pltpu


# --------------------------- kernel 1: QKV + rotary ------------------------- #

def qkv_rotary_kernel(x_ref, wqkv_ref, bqkv_ref, cos_ref, sin_ref,
                      q_ref, k_ref, v_ref, *, n_head, head_dim):
    C = n_head * head_dim
    hd2 = head_dim // 2

    x = x_ref[0]                                           # (tt, C) compute dtype
    qkv = jnp.dot(x, wqkv_ref[...],
                  preferred_element_type=jnp.float32) + bqkv_ref[0]   # (tt, 3C) f32

    cos = cos_ref[...]                                     # (tt, hd2) f32
    sin = sin_ref[...]

    q = qkv[:, 0 * C:1 * C]       # half-split per head: [evens | odds]
    k = qkv[:, 1 * C:2 * C]
    v_ref[0] = qkv[:, 2 * C:3 * C].astype(v_ref.dtype)

    # rotary per head: out_even = q1*cos - q2*sin ; out_odd = q1*sin + q2*cos
    for h in range(n_head):
        lo = h * head_dim
        mid = lo + hd2
        hi = lo + head_dim
        q1, q2 = q[:, lo:mid], q[:, mid:hi]
        k1, k2 = k[:, lo:mid], k[:, mid:hi]
        q_ref[0, :, lo:mid] = (q1 * cos - q2 * sin).astype(q_ref.dtype)
        q_ref[0, :, mid:hi] = (q1 * sin + q2 * cos).astype(q_ref.dtype)
        k_ref[0, :, lo:mid] = (k1 * cos - k2 * sin).astype(k_ref.dtype)
        k_ref[0, :, mid:hi] = (k1 * sin + k2 * cos).astype(k_ref.dtype)


# ------------------- kernel 2: flash attention + projection ----------------- #

def flash_attn_proj_kernel(q_ref, k_ref, v_ref, wproj_ref, bproj_ref, o_ref,
                           m_scr, l_scr, acc_scr, *, n_head, head_dim):
    qi = pl.program_id(1)
    ki = pl.program_id(2)

    @pl.when(ki == 0)
    def _init():
        m_scr[...] = jnp.full_like(m_scr, -1e30)
        l_scr[...] = jnp.zeros_like(l_scr)
        acc_scr[...] = jnp.zeros_like(acc_scr)

    @pl.when(ki <= qi)            # skip KV blocks above the causal diagonal
    def _update():
        q = q_ref[0]              # (tq, C), q already scaled by 1/sqrt(head_dim)
        k = k_ref[0]              # (tk, C)
        v = v_ref[0]              # (tk, C)
        tq, tk = q.shape[0], k.shape[0]

        # causal bias (only bites on the diagonal block; zero elsewhere)
        qpos = qi * tq + jax.lax.broadcasted_iota(jnp.int32, (tq, tk), 0)
        kpos = ki * tk + jax.lax.broadcasted_iota(jnp.int32, (tq, tk), 1)
        bias = jnp.where(qpos >= kpos, jnp.float32(0.0), jnp.float32(-1e30))

        dn_qkt = (((1,), (1,)), ((), ()))   # contract last dims (no .T / XLU)
        dn_pv = (((1,), (0,)), ((), ()))

        for h in range(n_head):
            lo = h * head_dim
            hi = lo + head_dim
            s = jax.lax.dot_general(q[:, lo:hi], k[:, lo:hi], dn_qkt,
                                    preferred_element_type=jnp.float32) + bias

            m_prev = m_scr[h]                                    # (tq, 1)
            m_new = jnp.maximum(m_prev, jnp.max(s, axis=-1, keepdims=True))
            alpha = jnp.exp(m_prev - m_new)
            p = jnp.exp(s - m_new)                               # (tq, tk) f32
            l_scr[h] = alpha * l_scr[h] + jnp.sum(p, axis=-1, keepdims=True)
            m_scr[h] = m_new

            pv = jax.lax.dot_general(p.astype(v.dtype), v[:, lo:hi], dn_pv,
                                     preferred_element_type=jnp.float32)
            acc_scr[:, lo:hi] = alpha * acc_scr[:, lo:hi] + pv

    @pl.when(ki == qi)            # last block that contributes to this q tile
    def _finalize():
        # deferred softmax normalization on the lane-dense (tq, C) accumulator
        for h in range(n_head):
            lo = h * head_dim
            hi = lo + head_dim
            inv_l = pl.reciprocal(l_scr[h], approx=False)        # (tq, 1)
            acc_scr[:, lo:hi] = acc_scr[:, lo:hi] * inv_l
        y = acc_scr[...].astype(wproj_ref.dtype)
        o_ref[0] = (jnp.dot(y, wproj_ref[...],
                            preferred_element_type=jnp.float32)
                    + bproj_ref[0]).astype(o_ref.dtype)


# ---------------------------------- wrapper --------------------------------- #

def _pick_seq_tile(T):
    for t in (256, 128):
        if T % t == 0:
            return t
    return T


def causal_self_attention(x, w_qkv, b_qkv, w_proj, b_proj, n_head,
                          *, compute_dtype=jnp.float32, seq_tile=None):
    """x: (B, T, C). w_qkv: (3C, C), w_proj: (C, C) in torch nn.Linear (out, in) layout."""
    B, T, C = x.shape
    assert C % n_head == 0
    head_dim = C // n_head
    assert head_dim % 2 == 0
    hd2 = head_dim // 2

    tile = seq_tile if seq_tile is not None else _pick_seq_tile(T)
    assert T % tile == 0
    nt = T // tile

    # ---- one-time host-side weight prep: permute q/k output columns into a
    #      per-head half-split order and fold 1/sqrt(head_dim) into q ---------
    scale = 1.0 / math.sqrt(head_dim)
    perm_h = jnp.concatenate([jnp.arange(0, head_dim, 2),
                              jnp.arange(1, head_dim, 2)])
    perm = (jnp.arange(n_head)[:, None] * head_dim + perm_h[None, :]).reshape(-1)

    wqkv_t = w_qkv.T                                   # (C, 3C) = (in, out)
    wq = wqkv_t[:, 0 * C:1 * C][:, perm] * scale
    wk = wqkv_t[:, 1 * C:2 * C][:, perm]
    wv = wqkv_t[:, 2 * C:3 * C]
    wqkv_p = jnp.concatenate([wq, wk, wv], axis=1).astype(compute_dtype)

    bq = b_qkv[0 * C:1 * C][perm] * scale
    bk = b_qkv[1 * C:2 * C][perm]
    bv = b_qkv[2 * C:3 * C]
    bqkv_p = jnp.concatenate([bq, bk, bv]).reshape(1, 3 * C).astype(jnp.float32)

    wproj_t = w_proj.T.astype(compute_dtype)           # (C, C)
    bproj2 = b_proj.reshape(1, C).astype(jnp.float32)

    # rotary tables, (T, head_dim/2); broadcast per head inside the kernel
    theta = 10000.0 ** (-jnp.arange(0, head_dim, 2, dtype=jnp.float32) / head_dim)
    ang = jnp.outer(jnp.arange(T, dtype=jnp.float32), theta)
    cos, sin = jnp.cos(ang), jnp.sin(ang)

    # ---- kernel 1: fused QKV projection + rotary ---------------------------
    qkv_kernel = functools.partial(qkv_rotary_kernel,
                                   n_head=n_head, head_dim=head_dim)
    q_rot, k_rot, v = pl.pallas_call(
        qkv_kernel,
        out_shape=tuple(jax.ShapeDtypeStruct((B, T, C), compute_dtype)
                        for _ in range(3)),
        grid_spec=pltpu.PrefetchScalarGridSpec(
            num_scalar_prefetch=0,
            grid=(B, nt),
            in_specs=[
                pl.BlockSpec((1, tile, C), lambda b, i: (b, i, 0)),   # x
                pl.BlockSpec((C, 3 * C), lambda b, i: (0, 0)),        # Wqkv^T (permuted)
                pl.BlockSpec((1, 3 * C), lambda b, i: (0, 0)),        # b_qkv (permuted)
                pl.BlockSpec((tile, hd2), lambda b, i: (i, 0)),       # cos
                pl.BlockSpec((tile, hd2), lambda b, i: (i, 0)),       # sin
            ],
            out_specs=tuple(pl.BlockSpec((1, tile, C), lambda b, i: (b, i, 0))
                            for _ in range(3)),
        ),
        compiler_params=pltpu.CompilerParams(
            dimension_semantics=("parallel", "parallel")),
    )(x.astype(compute_dtype), wqkv_p, bqkv_p, cos, sin)

    # ---- kernel 2: flash causal attention + output projection --------------
    attn_kernel = functools.partial(flash_attn_proj_kernel,
                                    n_head=n_head, head_dim=head_dim)
    q_map = lambda b, qi, ki: (b, qi, 0)
    kv_map = lambda b, qi, ki: (b, jnp.minimum(ki, qi), 0)   # clamp: no DMA above diag
    const2 = lambda b, qi, ki: (0, 0)

    out = pl.pallas_call(
        attn_kernel,
        out_shape=jax.ShapeDtypeStruct((B, T, C), x.dtype),
        grid_spec=pltpu.PrefetchScalarGridSpec(
            num_scalar_prefetch=0,
            grid=(B, nt, nt),
            in_specs=[
                pl.BlockSpec((1, tile, C), q_map),      # q_rot
                pl.BlockSpec((1, tile, C), kv_map),     # k_rot
                pl.BlockSpec((1, tile, C), kv_map),     # v
                pl.BlockSpec((C, C), const2),           # Wproj^T
                pl.BlockSpec((1, C), const2),           # b_proj
            ],
            out_specs=pl.BlockSpec((1, tile, C), q_map),
            scratch_shapes=[
                pltpu.VMEM((n_head, tile, 1), jnp.float32),   # running max m
                pltpu.VMEM((n_head, tile, 1), jnp.float32),   # running sum l
                pltpu.VMEM((tile, C), jnp.float32),           # (tq, C) acc slab
            ],
        ),
        compiler_params=pltpu.CompilerParams(
            dimension_semantics=("parallel", "parallel", "arbitrary")),
    )(q_rot, k_rot, v, wproj_t, bproj2)
    return out


# ------------------------------ pure-JAX reference -------------------------- #

def reference(x, w_qkv, b_qkv, w_proj, b_proj, n_head):
    B, T, C = x.shape
    hd = C // n_head
    qkv = x @ w_qkv.T + b_qkv
    q, k, v = jnp.split(qkv, 3, axis=-1)

    def rot(t):  # (B, T, H, hd) interleaved-pair rotary
        theta = 10000.0 ** (-jnp.arange(0, hd, 2, dtype=jnp.float32) / hd)
        ang = jnp.outer(jnp.arange(T, dtype=jnp.float32), theta)
        sinv = jnp.sin(ang)[None, :, None, :]
        cosv = jnp.cos(ang)[None, :, None, :]
        x1 = t[..., 0::2]
        x2 = t[..., 1::2]
        x1r = x1 * cosv - x2 * sinv
        x2r = x1 * sinv + x2 * cosv
        return jnp.stack([x1r, x2r], axis=-1).reshape(B, T, n_head, hd)

    q = rot(q.reshape(B, T, n_head, hd)).transpose(0, 2, 1, 3)
    k = rot(k.reshape(B, T, n_head, hd)).transpose(0, 2, 1, 3)
    v = v.reshape(B, T, n_head, hd).transpose(0, 2, 1, 3)

    s = jnp.einsum("bhqd,bhkd->bhqk", q, k) / math.sqrt(hd)
    mask = jnp.tril(jnp.ones((T, T), bool))
    s = jnp.where(mask, s, -jnp.inf)
    p = jax.nn.softmax(s, axis=-1)
    y = jnp.einsum("bhqk,bhkd->bhqd", p, v)
    y = y.transpose(0, 2, 1, 3).reshape(B, T, C)
    return y @ w_proj.T + b_proj


# ------------------------------------ main ----------------------------------- #

if __name__ == "__main__":
    B, T, C, n_head = 2, 16, 32, 4       # head_dim = 8

    key = jax.random.PRNGKey(0)
    kx, k1, k2, k3, k4 = jax.random.split(key, 5)

    x = jax.random.normal(kx, (B, T, C), jnp.float32)
    # torch nn.Linear layout: (out, in)
    w_qkv = 0.02 * jax.random.normal(k1, (3 * C, C), jnp.float32)
    b_qkv = 0.01 * jax.random.normal(k2, (3 * C,), jnp.float32)
    w_proj = 0.02 * jax.random.normal(k3, (C, C), jnp.float32)
    b_proj = 0.01 * jax.random.normal(k4, (C,), jnp.float32)

    ref = reference(x, w_qkv, b_qkv, w_proj, b_proj, n_head)

    # f32 path with seq_tile=8 -> 2x2 q/kv tiles: exercises online softmax,
    # causal block skipping, and the clamped kv index map.
    out = causal_self_attention(x, w_qkv, b_qkv, w_proj, b_proj, n_head,
                                compute_dtype=jnp.float32, seq_tile=8)
    out = jax.block_until_ready(out)
    assert out.shape == (B, T, C)
    assert jnp.allclose(out, ref, atol=1e-4, rtol=1e-4), "f32 kernel mismatch vs reference"

    # bf16 matmul path (v6e/v7x recipe: bf16 operands, f32 accumulation)
    out_bf16 = causal_self_attention(x, w_qkv, b_qkv, w_proj, b_proj, n_head,
                                     compute_dtype=jnp.bfloat16)
    out_bf16 = jax.block_until_ready(out_bf16)
    assert jnp.allclose(out_bf16, ref, atol=5e-2, rtol=5e-2), "bf16 kernel mismatch vs reference"

    print("KERNEL_OK")
</pallas_src>

<mosaic_0001>
module attributes {stable_mosaic.version = 11 : i64} {
  func.func @qkv_rotary_kernel(%arg0: i32, %arg1: i32, %arg2: memref<1x8x32xf32, #tpu.memory_space<vmem>>, %arg3: memref<32x96xf32, #tpu.memory_space<vmem>>, %arg4: memref<1x96xf32, #tpu.memory_space<vmem>>, %arg5: memref<8x4xf32, #tpu.memory_space<vmem>>, %arg6: memref<8x4xf32, #tpu.memory_space<vmem>>, %arg7: memref<1x8x32xf32, #tpu.memory_space<vmem>>, %arg8: memref<1x8x32xf32, #tpu.memory_space<vmem>>, %arg9: memref<1x8x32xf32, #tpu.memory_space<vmem>>) attributes {dimension_semantics = [#tpu.dimension_semantics<parallel>, #tpu.dimension_semantics<parallel>], iteration_bounds = array<i64: 2, 2>, scalar_prefetch = 0 : i64, scratch_operands = 0 : i64, tpu.core_type = #tpu.core_type<tc>, window_params = [{transform_indices = @transform_0, window_bounds = array<i64: 1, 8, 32>}, {pipeline_mode = #tpu.pipeline_mode<synchronous>, transform_indices = @transform_1, window_bounds = array<i64: 32, 96>}, {pipeline_mode = #tpu.pipeline_mode<synchronous>, transform_indices = @transform_2, window_bounds = array<i64: 1, 96>}, {transform_indices = @transform_3, window_bounds = array<i64: 8, 4>}, {transform_indices = @transform_4, window_bounds = array<i64: 8, 4>}, {transform_indices = @transform_5, window_bounds = array<i64: 1, 8, 32>}, {transform_indices = @transform_6, window_bounds = array<i64: 1, 8, 32>}, {transform_indices = @transform_7, window_bounds = array<i64: 1, 8, 32>}]} {
    %c0 = arith.constant 0 : index
    %c0_0 = arith.constant 0 : index
    %c0_1 = arith.constant 0 : index
    %0 = vector.load %arg2[%c0, %c0_0, %c0_1] : memref<1x8x32xf32, #tpu.memory_space<vmem>>, vector<1x8x32xf32>
    %1 = vector.shape_cast %0 : vector<1x8x32xf32> to vector<8x32xf32>
    %c0_2 = arith.constant 0 : index
    %c0_3 = arith.constant 0 : index
    %2 = vector.load %arg3[%c0_2, %c0_3] : memref<32x96xf32, #tpu.memory_space<vmem>>, vector<32x96xf32>
    %cst = arith.constant dense<0.000000e+00> : vector<8x96xf32>
    %3 = tpu.matmul %1, %2, %cst {dimension_numbers = #tpu.dot_dimension_numbers<[1], [0], [0], [1], [0, 0, 1, 1], [], []>} : vector<8x32xf32>, vector<32x96xf32>, vector<8x96xf32> -> vector<8x96xf32>
    %c0_4 = arith.constant 0 : index
    %c0_5 = arith.constant 0 : index
    %4 = vector.load %arg4[%c0_4, %c0_5] : memref<1x96xf32, #tpu.memory_space<vmem>>, vector<1x96xf32>
    %5 = vector.shape_cast %4 : vector<1x96xf32> to vector<96xf32>
    %6 = vector.shape_cast %5 : vector<96xf32> to vector<1x96xf32>
    %7 = vector.broadcast %6 : vector<1x96xf32> to vector<8x96xf32>
    %8 = arith.addf %3, %7 : vector<8x96xf32>
    %c0_6 = arith.constant 0 : index
    %c0_7 = arith.constant 0 : index
    %9 = vector.load %arg5[%c0_6, %c0_7] : memref<8x4xf32, #tpu.memory_space<vmem>>, vector<8x4xf32>
    %c0_8 = arith.constant 0 : index
    %c0_9 = arith.constant 0 : index
    %10 = vector.load %arg6[%c0_8, %c0_9] : memref<8x4xf32, #tpu.memory_space<vmem>>, vector<8x4xf32>
    %11 = vector.extract_strided_slice %8 {offsets = [0, 0], sizes = [8, 32], strides = [1, 1]} : vector<8x96xf32> to vector<8x32xf32>
    %12 = vector.extract_strided_slice %8 {offsets = [0, 32], sizes = [8, 32], strides = [1, 1]} : vector<8x96xf32> to vector<8x32xf32>
    %13 = vector.extract_strided_slice %8 {offsets = [0, 64], sizes = [8, 32], strides = [1, 1]} : vector<8x96xf32> to vector<8x32xf32>
    %c0_10 = arith.constant 0 : index
    %c0_11 = arith.constant 0 : index
    %c0_12 = arith.constant 0 : index
    %14 = vector.load %arg9[%c0_10, %c0_11, %c0_12] : memref<1x8x32xf32, #tpu.memory_space<vmem>>, vector<1x8x32xf32>
    %15 = vector.shape_cast %14 : vector<1x8x32xf32> to vector<8x32xf32>
    %16 = vector.shape_cast %13 : vector<8x32xf32> to vector<1x8x32xf32>
    tpu.vector_store %arg9[%c0_10, %c0_11, %c0_12], %16 {strides = array<i32>} : memref<1x8x32xf32, #tpu.memory_space<vmem>>, vector<1x8x32xf32>,
    %17 = vector.extract_strided_slice %11 {offsets = [0, 0], sizes = [8, 4], strides = [1, 1]} : vector<8x32xf32> to vector<8x4xf32>
    %18 = vector.extract_strided_slice %11 {offsets = [0, 4], sizes = [8, 4], strides = [1, 1]} : vector<8x32xf32> to vector<8x4xf32>
    %19 = vector.extract_strided_slice %12 {offsets = [0, 0], sizes = [8, 4], strides = [1, 1]} : vector<8x32xf32> to vector<8x4xf32>
    %20 = vector.extract_strided_slice %12 {offsets = [0, 4], sizes = [8, 4], strides = [1, 1]} : vector<8x32xf32> to vector<8x4xf32>
    %21 = arith.mulf %17, %9 : vector<8x4xf32>
    %22 = arith.mulf %18, %10 : vector<8x4xf32>
    %23 = arith.subf %21, %22 : vector<8x4xf32>
    %c0_13 = arith.constant 0 : index
    %c0_14 = arith.constant 0 : index
    %c0_15 = arith.constant 0 : index
    %24 = vector.load %arg7[%c0_13, %c0_14, %c0_15] : memref<1x8x32xf32, #tpu.memory_space<vmem>>, vector<1x8x4xf32>
    %25 = vector.shape_cast %24 : vector<1x8x4xf32> to vector<8x4xf32>
    %26 = vector.shape_cast %23 : vector<8x4xf32> to vector<1x8x4xf32>
    tpu.vector_store %arg7[%c0_13, %c0_14, %c0_15], %26 {strides = array<i32>} : memref<1x8x32xf32, #tpu.memory_space<vmem>>, vector<1x8x4xf32>,
    %27 = arith.mulf %17, %10 : vector<8x4xf32>
    %28 = arith.mulf %18, %9 : vector<8x4xf32>
    %29 = arith.addf %27, %28 : vector<8x4xf32>
    %c0_16 = arith.constant 0 : index
    %c0_17 = arith.constant 0 : index
    %c4 = arith.constant 4 : index
    %30 = vector.load %arg7[%c0_16, %c0_17, %c4] : memref<1x8x32xf32, #tpu.memory_space<vmem>>, vector<1x8x4xf32>
    %31 = vector.shape_cast %30 : vector<1x8x4xf32> to vector<8x4xf32>
    %32 = vector.shape_cast %29 : vector<8x4xf32> to vector<1x8x4xf32>
    tpu.vector_store %arg7[%c0_16, %c0_17, %c4], %32 {strides = array<i32>} : memref<1x8x32xf32, #tpu.memory_space<vmem>>, vector<1x8x4xf32>,
    %33 = arith.mulf %19, %9 : vector<8x4xf32>
    %34 = arith.mulf %20, %10 : vector<8x4xf32>
    %35 = arith.subf %33, %34 : vector<8x4xf32>
    %c0_18 = arith.constant 0 : index
    %c0_19 = arith.constant 0 : index
    %c0_20 = arith.constant 0 : index
    %36 = vector.load %arg8[%c0_18, %c0_19, %c0_20] : memref<1x8x32xf32, #tpu.memory_space<vmem>>, vector<1x8x4xf32>
    %37 = vector.shape_cast %36 : vector<1x8x4xf32> to vector<8x4xf32>
    %38 = vector.shape_cast %35 : vector<8x4xf32> to vector<1x8x4xf32>
    tpu.vector_store %arg8[%c0_18, %c0_19, %c0_20], %38 {strides = array<i32>} : memref<1x8x32xf32, #tpu.memory_space<vmem>>, vector<1x8x4xf32>,
    %39 = arith.mulf %19, %10 : vector<8x4xf32>
    %40 = arith.mulf %20, %9 : vector<8x4xf32>
    %41 = arith.addf %39, %40 : vector<8x4xf32>
    %c0_21 = arith.constant 0 : index
    %c0_22 = arith.constant 0 : index
    %c4_23 = arith.constant 4 : index
    %42 = vector.load %arg8[%c0_21, %c0_22, %c4_23] : memref<1x8x32xf32, #tpu.memory_space<vmem>>, vector<1x8x4xf32>
    %43 = vector.shape_cast %42 : vector<1x8x4xf32> to vector<8x4xf32>
    %44 = vector.shape_cast %41 : vector<8x4xf32> to vector<1x8x4xf32>
    tpu.vector_store %arg8[%c0_21, %c0_22, %c4_23], %44 {strides = array<i32>} : memref<1x8x32xf32, #tpu.memory_space<vmem>>, vector<1x8x4xf32>,
    %45 = vector.extract_strided_slice %11 {offsets = [0, 8], sizes = [8, 4], strides = [1, 1]} : vector<8x32xf32> to vector<8x4xf32>
    %46 = vector.extract_strided_slice %11 {offsets = [0, 12], sizes = [8, 4], strides = [1, 1]} : vector<8x32xf32> to vector<8x4xf32>
    %47 = vector.extract_strided_slice %12 {offsets = [0, 8], sizes = [8, 4], strides = [1, 1]} : vector<8x32xf32> to vector<8x4xf32>
    %48 = vector.extract_strided_slice %12 {offsets = [0, 12], sizes = [8, 4], strides = [1, 1]} : vector<8x32xf32> to vector<8x4xf32>
    %49 = arith.mulf %45, %9 : vector<8x4xf32>
    %50 = arith.mulf %46, %10 : vector<8x4xf32>
    %51 = arith.subf %49, %50 : vector<8x4xf32>
    %c0_24 = arith.constant 0 : index
    %c0_25 = arith.constant 0 : index
    %c8 = arith.constant 8 : index
    %52 = vector.load %arg7[%c0_24, %c0_25, %c8] : memref<1x8x32xf32, #tpu.memory_space<vmem>>, vector<1x8x4xf32>
    %53 = vector.shape_cast %52 : vector<1x8x4xf32> to vector<8x4xf32>
    %54 = vector.shape_cast %51 : vector<8x4xf32> to vector<1x8x4xf32>
    tpu.vector_store %arg7[%c0_24, %c0_25, %c8], %54 {strides = array<i32>} : memref<1x8x32xf32, #tpu.memory_space<vmem>>, vector<1x8x4xf32>,
    %55 = arith.mulf %45, %10 : vector<8x4xf32>
    %56 = arith.mulf %46, %9 : vector<8x4xf32>
    %57 = arith.addf %55, %56 : vector<8x4xf32>
    %c0_26 = arith.constant 0 : index
    %c0_27 = arith.constant 0 : index
    %c12 = arith.constant 12 : index
    %58 = vector.load %arg7[%c0_26, %c0_27, %c12] : memref<1x8x32xf32, #tpu.memory_space<vmem>>, vector<1x8x4xf32>
    %59 = vector.shape_cast %58 : vector<1x8x4xf32> to vector<8x4xf32>
    %60 = vector.shape_cast %57 : vector<8x4xf32> to vector<1x8x4xf32>
    tpu.vector_store %arg7[%c0_26, %c0_27, %c12], %60 {strides = array<i32>} : memref<1x8x32xf32, #tpu.memory_space<vmem>>, vector<1x8x4xf32>,
    %61 = arith.mulf %47, %9 : vector<8x4xf32>
    %62 = arith.mulf %48, %10 : vector<8x4xf32>
    %63 = arith.subf %61, %62 : vector<8x4xf32>
    %c0_28 = arith.constant 0 : index
    %c0_29 = arith.constant 0 : index
    %c8_30 = arith.constant 8 : index
    %64 = vector.load %arg8[%c0_28, %c0_29, %c8_30] : memref<1x8x32xf32, #tpu.memory_space<vmem>>, vector<1x8x4xf32>
    %65 = vector.shape_cast %64 : vector<1x8x4xf32> to vector<8x4xf32>
    %66 = vector.shape_cast %63 : vector<8x4xf32> to vector<1x8x4xf32>
    tpu.vector_store %arg8[%c0_28, %c0_29, %c8_30], %66 {strides = array<i32>} : memref<1x8x32xf32, #tpu.memory_space<vmem>>, vector<1x8x4xf32>,
    %67 = arith.mulf %47, %10 : vector<8x4xf32>
    %68 = arith.mulf %48, %9 : vector<8x4xf32>
    %69 = arith.addf %67, %68 : vector<8x4xf32>
    %c0_31 = arith.constant 0 : index
    %c0_32 = arith.constant 0 : index
    %c12_33 = arith.constant 12 : index
    %70 = vector.load %arg8[%c0_31, %c0_32, %c12_33] : memref<1x8x32xf32, #tpu.memory_space<vmem>>, vector<1x8x4xf32>
    %71 = vector.shape_cast %70 : vector<1x8x4xf32> to vector<8x4xf32>
    %72 = vector.shape_cast %69 : vector<8x4xf32> to vector<1x8x4xf32>
    tpu.vector_store %arg8[%c0_31, %c0_32, %c12_33], %72 {strides = array<i32>} : memref<1x8x32xf32, #tpu.memory_space<vmem>>, vector<1x8x4xf32>,
    %73 = vector.extract_strided_slice %11 {offsets = [0, 16], sizes = [8, 4], strides = [1, 1]} : vector<8x32xf32> to vector<8x4xf32>
    %74 = vector.extract_strided_slice %11 {offsets = [0, 20], sizes = [8, 4], strides = [1, 1]} : vector<8x32xf32> to vector<8x4xf32>
    %75 = vector.extract_strided_slice %12 {offsets = [0, 16], sizes = [8, 4], strides = [1, 1]} : vector<8x32xf32> to vector<8x4xf32>
    %76 = vector.extract_strided_slice %12 {offsets = [0, 20], sizes = [8, 4], strides = [1, 1]} : vector<8x32xf32> to vector<8x4xf32>
    %77 = arith.mulf %73, %9 : vector<8x4xf32>
    %78 = arith.mulf %74, %10 : vector<8x4xf32>
    %79 = arith.subf %77, %78 : vector<8x4xf32>
    %c0_34 = arith.constant 0 : index
    %c0_35 = arith.constant 0 : index
    %c16 = arith.constant 16 : index
    %80 = vector.load %arg7[%c0_34, %c0_35, %c16] : memref<1x8x32xf32, #tpu.memory_space<vmem>>, vector<1x8x4xf32>
    %81 = vector.shape_cast %80 : vector<1x8x4xf32> to vector<8x4xf32>
    %82 = vector.shape_cast %79 : vector<8x4xf32> to vector<1x8x4xf32>
    tpu.vector_store %arg7[%c0_34, %c0_35, %c16], %82 {strides = array<i32>} : memref<1x8x32xf32, #tpu.memory_space<vmem>>, vector<1x8x4xf32>,
    %83 = arith.mulf %73, %10 : vector<8x4xf32>
    %84 = arith.mulf %74, %9 : vector<8x4xf32>
    %85 = arith.addf %83, %84 : vector<8x4xf32>
    %c0_36 = arith.constant 0 : index
    %c0_37 = arith.constant 0 : index
    %c20 = arith.constant 20 : index
    %86 = vector.load %arg7[%c0_36, %c0_37, %c20] : memref<1x8x32xf32, #tpu.memory_space<vmem>>, vector<1x8x4xf32>
    %87 = vector.shape_cast %86 : vector<1x8x4xf32> to vector<8x4xf32>
    %88 = vector.shape_cast %85 : vector<8x4xf32> to vector<1x8x4xf32>
    tpu.vector_store %arg7[%c0_36, %c0_37, %c20], %88 {strides = array<i32>} : memref<1x8x32xf32, #tpu.memory_space<vmem>>, vector<1x8x4xf32>,
    %89 = arith.mulf %75, %9 : vector<8x4xf32>
    %90 = arith.mulf %76, %10 : vector<8x4xf32>
    %91 = arith.subf %89, %90 : vector<8x4xf32>
    %c0_38 = arith.constant 0 : index
    %c0_39 = arith.constant 0 : index
    %c16_40 = arith.constant 16 : index
    %92 = vector.load %arg8[%c0_38, %c0_39, %c16_40] : memref<1x8x32xf32, #tpu.memory_space<vmem>>, vector<1x8x4xf32>
    %93 = vector.shape_cast %92 : vector<1x8x4xf32> to vector<8x4xf32>
    %94 = vector.shape_cast %91 : vector<8x4xf32> to vector<1x8x4xf32>
    tpu.vector_store %arg8[%c0_38, %c0_39, %c16_40], %94 {strides = array<i32>} : memref<1x8x32xf32, #tpu.memory_space<vmem>>, vector<1x8x4xf32>,
    %95 = arith.mulf %75, %10 : vector<8x4xf32>
    %96 = arith.mulf %76, %9 : vector<8x4xf32>
    %97 = arith.addf %95, %96 : vector<8x4xf32>
    %c0_41 = arith.constant 0 : index
    %c0_42 = arith.constant 0 : index
    %c20_43 = arith.constant 20 : index
    %98 = vector.load %arg8[%c0_41, %c0_42, %c20_43] : memref<1x8x32xf32, #tpu.memory_space<vmem>>, vector<1x8x4xf32>
    %99 = vector.shape_cast %98 : vector<1x8x4xf32> to vector<8x4xf32>
    %100 = vector.shape_cast %97 : vector<8x4xf32> to vector<1x8x4xf32>
    tpu.vector_store %arg8[%c0_41, %c0_42, %c20_43], %100 {strides = array<i32>} : memref<1x8x32xf32, #tpu.memory_space<vmem>>, vector<1x8x4xf32>,
    %101 = vector.extract_strided_slice %11 {offsets = [0, 24], sizes = [8, 4], strides = [1, 1]} : vector<8x32xf32> to vector<8x4xf32>
    %102 = vector.extract_strided_slice %11 {offsets = [0, 28], sizes = [8, 4], strides = [1, 1]} : vector<8x32xf32> to vector<8x4xf32>
    %103 = vector.extract_strided_slice %12 {offsets = [0, 24], sizes = [8, 4], strides = [1, 1]} : vector<8x32xf32> to vector<8x4xf32>
    %104 = vector.extract_strided_slice %12 {offsets = [0, 28], sizes = [8, 4], strides = [1, 1]} : vector<8x32xf32> to vector<8x4xf32>
    %105 = arith.mulf %101, %9 : vector<8x4xf32>
    %106 = arith.mulf %102, %10 : vector<8x4xf32>
    %107 = arith.subf %105, %106 : vector<8x4xf32>
    %c0_44 = arith.constant 0 : index
    %c0_45 = arith.constant 0 : index
    %c24 = arith.constant 24 : index
    %108 = vector.load %arg7[%c0_44, %c0_45, %c24] : memref<1x8x32xf32, #tpu.memory_space<vmem>>, vector<1x8x4xf32>
    %109 = vector.shape_cast %108 : vector<1x8x4xf32> to vector<8x4xf32>
    %110 = vector.shape_cast %107 : vector<8x4xf32> to vector<1x8x4xf32>
    tpu.vector_store %arg7[%c0_44, %c0_45, %c24], %110 {strides = array<i32>} : memref<1x8x32xf32, #tpu.memory_space<vmem>>, vector<1x8x4xf32>,
    %111 = arith.mulf %101, %10 : vector<8x4xf32>
    %112 = arith.mulf %102, %9 : vector<8x4xf32>
    %113 = arith.addf %111, %112 : vector<8x4xf32>
    %c0_46 = arith.constant 0 : index
    %c0_47 = arith.constant 0 : index
    %c28 = arith.constant 28 : index
    %114 = vector.load %arg7[%c0_46, %c0_47, %c28] : memref<1x8x32xf32, #tpu.memory_space<vmem>>, vector<1x8x4xf32>
    %115 = vector.shape_cast %114 : vector<1x8x4xf32> to vector<8x4xf32>
    %116 = vector.shape_cast %113 : vector<8x4xf32> to vector<1x8x4xf32>
    tpu.vector_store %arg7[%c0_46, %c0_47, %c28], %116 {strides = array<i32>} : memref<1x8x32xf32, #tpu.memory_space<vmem>>, vector<1x8x4xf32>,
    %117 = arith.mulf %103, %9 : vector<8x4xf32>
    %118 = arith.mulf %104, %10 : vector<8x4xf32>
    %119 = arith.subf %117, %118 : vector<8x4xf32>
    %c0_48 = arith.constant 0 : index
    %c0_49 = arith.constant 0 : index
    %c24_50 = arith.constant 24 : index
    %120 = vector.load %arg8[%c0_48, %c0_49, %c24_50] : memref<1x8x32xf32, #tpu.memory_space<vmem>>, vector<1x8x4xf32>
    %121 = vector.shape_cast %120 : vector<1x8x4xf32> to vector<8x4xf32>
    %122 = vector.shape_cast %119 : vector<8x4xf32> to vector<1x8x4xf32>
    tpu.vector_store %arg8[%c0_48, %c0_49, %c24_50], %122 {strides = array<i32>} : memref<1x8x32xf32, #tpu.memory_space<vmem>>, vector<1x8x4xf32>,
    %123 = arith.mulf %103, %10 : vector<8x4xf32>
    %124 = arith.mulf %104, %9 : vector<8x4xf32>
    %125 = arith.addf %123, %124 : vector<8x4xf32>
    %c0_51 = arith.constant 0 : index
    %c0_52 = arith.constant 0 : index
    %c28_53 = arith.constant 28 : index
    %126 = vector.load %arg8[%c0_51, %c0_52, %c28_53] : memref<1x8x32xf32, #tpu.memory_space<vmem>>, vector<1x8x4xf32>
    %127 = vector.shape_cast %126 : vector<1x8x4xf32> to vector<8x4xf32>
    %128 = vector.shape_cast %125 : vector<8x4xf32> to vector<1x8x4xf32>
    tpu.vector_store %arg8[%c0_51, %c0_52, %c28_53], %128 {strides = array<i32>} : memref<1x8x32xf32, #tpu.memory_space<vmem>>, vector<1x8x4xf32>,
    return
  }
  func.func @transform_0(%arg0: i32, %arg1: i32) -> (i32, i32, i32) {
    %c0_i32 = arith.constant 0 : i32
    %c0_i32_0 = arith.constant 0 : i32
    return %arg0, %arg1, %c0_i32 : i32, i32, i32
  }
  func.func @transform_1(%arg0: i32, %arg1: i32) -> (i32, i32) {
    %c0_i32 = arith.constant 0 : i32
    %c0_i32_0 = arith.constant 0 : i32
    %c0_i32_1 = arith.constant 0 : i32
    return %c0_i32, %c0_i32_0 : i32, i32
  }
  func.func @transform_2(%arg0: i32, %arg1: i32) -> (i32, i32) {
    %c0_i32 = arith.constant 0 : i32
    %c0_i32_0 = arith.constant 0 : i32
    %c0_i32_1 = arith.constant 0 : i32
    return %c0_i32, %c0_i32_0 : i32, i32
  }
  func.func @transform_3(%arg0: i32, %arg1: i32) -> (i32, i32) {
    %c0_i32 = arith.constant 0 : i32
    %c0_i32_0 = arith.constant 0 : i32
    return %arg1, %c0_i32 : i32, i32
  }
  func.func @transform_4(%arg0: i32, %arg1: i32) -> (i32, i32) {
    %c0_i32 = arith.constant 0 : i32
    %c0_i32_0 = arith.constant 0 : i32
    return %arg1, %c0_i32 : i32, i32
  }
  func.func @transform_5(%arg0: i32, %arg1: i32) -> (i32, i32, i32) {
    %c0_i32 = arith.constant 0 : i32
    %c0_i32_0 = arith.constant 0 : i32
    return %arg0, %arg1, %c0_i32 : i32, i32, i32
  }
  func.func @transform_6(%arg0: i32, %arg1: i32) -> (i32, i32, i32) {
    %c0_i32 = arith.constant 0 : i32
    %c0_i32_0 = arith.constant 0 : i32
    return %arg0, %arg1, %c0_i32 : i32, i32, i32
  }
  func.func @transform_7(%arg0: i32, %arg1: i32) -> (i32, i32, i32) {
    %c0_i32 = arith.constant 0 : i32
    %c0_i32_0 = arith.constant 0 : i32
    return %arg0, %arg1, %c0_i32 : i32, i32, i32
  }
}

</mosaic_0001>

<llo_original>
// kernel: tpu_custom_call.1
$region0: #{tpu_custom_call.1}
  #allocation0 [shape = 'u32[]', space=smem, size = 0x4, offset = 0x4, fixed_abs, tag = 'smem constant byte address 0x4 - core index']
  #allocation1 [shape = 'u32[144,128]{1,0:T(1,128)}', space=vmem, size = 0x12000, scoped, tag = 'internal scratch']
  %s0 = inlined_call_operand.vmem [shape: f32[2,16,32], index: 0, kind: input, shape index: {}]
  %s1 = inlined_call_operand.hbm [shape: f32[32,96], index: 1, kind: input, shape index: {}]
  %s2 = inlined_call_operand.vmem [shape: f32[1,96], index: 2, kind: input, shape index: {}]
  %s3 = inlined_call_operand.vmem [shape: f32[16,4], index: 3, kind: input, shape index: {}]
  %s4 = inlined_call_operand.vmem [shape: f32[16,4], index: 4, kind: input, shape index: {}]
  %s5 = inlined_call_operand.hbm [shape: f32[2,16,32], index: 5, kind: output, shape index: {0}]
  %s6 = inlined_call_operand.hbm [shape: f32[2,16,32], index: 6, kind: output, shape index: {1}]
  %s7 = inlined_call_operand.hbm [shape: f32[2,16,32], index: 7, kind: output, shape index: {2}]
  %8 = xla_tuple %s5, %s6, %s7
  %s9 = sld [smem:[#allocation0]]
  $region73: #{tpu_custom_call.1} parent=0
    _
  %s11 = ssub.s32 1, %s9
  %s12 = scalar_select 0, %s11, %s9
  $region1: #{tpu_custom_call.1} parent=0
    #allocation2 [shape = 'u8[16384]{0}', space=vmem, size = 0x4000, scoped, tag = 'input window, operand 1, single buffered']
    #allocation3 [shape = 's32[2]{0}', space=sflag, size = 0x8, scoped, tag = 'scoped memory for tpu_custom_call.1']
    #allocation4 [shape = 's32[2]{0}', space=sflag, size = 0x8, scoped, tag = 'scoped memory for tpu_custom_call.1']
    #allocation5 [shape = 'u8[8192]{0}', space=vmem, size = 0x2000, scoped, tag = 'output window, operand 0']
    #allocation6 [shape = 'u8[8192]{0}', space=vmem, size = 0x2000, scoped, tag = 'output window, operand 1']
    #allocation7 [shape = 's32[2]{0}', space=sflag, size = 0x8, scoped, tag = 'scoped memory for tpu_custom_call.1']
    #allocation8 [shape = 'u8[8192]{0}', space=vmem, size = 0x2000, scoped, tag = 'output window, operand 2']
    %13 = vsyncpa [#allocation3], 0
    %14 = vsyncpa [#allocation4], 0
    %s15 = scalar_lea.sflag [#allocation4], 1
    %16 = vsyncpa %s15, 0
    %17 = vsyncpa [#allocation7], 0
    %s18 = scalar_lea.sflag [#allocation7], 1
    %19 = vsyncpa %s18, 0
    loop: start=0, step=1, limit=6
    $region2: #{tpu_custom_call.1} parent=1 // loop_pre_header
      _
    $region3: #{tpu_custom_call.1} parent=1 // loop_header
      %s21 = sphi 0, %s25
      %p22 = scmp.ge.s32.totalorder %s21, 6
      %s28 = sphi 0, %s40
      %s29 = sphi 0, %s36
      %s30 = sphi 0, %s28
      %s31 = sphi 0, %s29
      %s32 = sphi 0, %s30
      %s33 = sphi 0, %s31
      %s45 = sphi 0, %s47
      %s48 = sphi 0, %s45
      %s49 = sphi 0, %s48
      %s65 = sphi 0, %s49
      %s69 = sphi 0, %s69
      %s71 = sphi 0, %s69
      %s72 = sphi 0, %s71
      %s86 = sphi 0, %s72
      %s90 = sphi 0, %s90
      %s92 = sphi 0, %s90
      %s93 = sphi 0, %s92
      %s107 = sphi 0, %s93
      %s113 = sphi 0, %s115
      %s116 = sphi 0, %s113
      %s117 = sphi 0, %s116
      %s133 = sphi 0, %s117
      %s139 = sphi 0, %s141
      %s142 = sphi 0, %s139
      %s143 = sphi 0, %s142
      %s159 = sphi 0, %s143
      %s167 = sphi 0, %s169
      %s170 = sphi 0, %s167
      %s171 = sphi 0, %s170
      %s187 = sphi 0, %s171
      %s195 = sphi 0, %s197
      %s198 = sphi 0, %s195
      %s199 = sphi 0, %s198
      %s215 = sphi 0, %s199
      %s223 = sphi 0, %s225
      %s226 = sphi 0, %s223
      %s227 = sphi 0, %s226
      %s243 = sphi 0, %s227
    $region4: #{tpu_custom_call.1} parent=1 // loop_header_branch
      %24 = sbr.rel (%p22) target = $region8
    $region5: #{tpu_custom_call.1} parent=1 // loop_body
      %s26 = ssub.s32 %s21, 1
      %s27 = ssub.s32 %s21, 2
      %s34 = sadd.s32 1, %s29
      %p35 = scmp.ge.s32.totalorder %s34, 2
      %s36 = scalar_select %p35, 0, %s34
      %s37 = sadd.s32 1, %s28
      %s38 = scalar_select %p35, %s37, %s28
      %p39 = scmp.ge.s32.totalorder %s38, 2
      %s40 = scalar_select %p39, 0, %s38
      %s41 = ssub.s32 %s28, %s40
      %s42 = ssub.s32 %s29, %s36
      %s43 = sor.u32 %s41, %s42
      %p44 = scmp.eq.s32.totalorder %s43, 0
      %s46 = sadd.s32 %s45, 1
      %s47 = scalar_select %p44, %s45, %s46
      %p50 = pneg %p44
      %p51 = scmp.eq.s32.totalorder %s21, 3
      %p52 = por %p50, %p51
      %p53 = scmp.ne.s32.totalorder %s45, %s48
      %p54 = scmp.eq.s32.totalorder %s21, 0
      %p55 = por %p53, %p54
      %p56 = scmp.ne.s32.totalorder %s45, %s48
      %p57 = scmp.eq.s32.totalorder %s26, 3
      %p58 = por %p56, %p57
      %p59 = scmp.ne.s32.totalorder %s48, %s49
      %p60 = scmp.eq.s32.totalorder %s26, 0
      %p61 = por %p59, %p60
      %p62 = scmp.ne.s32.totalorder %s48, %s49
      %p63 = scmp.eq.s32.totalorder %s27, 3
      %p64 = por %p62, %p63
      %p66 = scmp.ne.s32.totalorder %s49, %s65
      %p67 = scmp.eq.s32.totalorder %s27, 0
      %p68 = por %p66, %p67
      %s70 = sadd.s32 %s69, 1
      %p73 = scmp.eq.s32.totalorder %s21, 3
      %p74 = scmp.ne.s32.totalorder %s69, %s71
      %p75 = scmp.eq.s32.totalorder %s21, 0
      %p76 = por %p74, %p75
      %p77 = scmp.ne.s32.totalorder %s69, %s71
      %p78 = scmp.eq.s32.totalorder %s26, 3
      %p79 = por %p77, %p78
      %p80 = scmp.ne.s32.totalorder %s71, %s72
      %p81 = scmp.eq.s32.totalorder %s26, 0
      %p82 = por %p80, %p81
      %p83 = scmp.ne.s32.totalorder %s71, %s72
      %p84 = scmp.eq.s32.totalorder %s27, 3
      %p85 = por %p83, %p84
      %p87 = scmp.ne.s32.totalorder %s72, %s86
      %p88 = scmp.eq.s32.totalorder %s27, 0
      %p89 = por %p87, %p88
      %s91 = sadd.s32 %s90, 1
      %p94 = scmp.eq.s32.totalorder %s21, 3
      %p95 = scmp.ne.s32.totalorder %s90, %s92
      %p96 = scmp.eq.s32.totalorder %s21, 0
      %p97 = por %p95, %p96
      %p98 = scmp.ne.s32.totalorder %s90, %s92
      %p99 = scmp.eq.s32.totalorder %s26, 3
      %p100 = por %p98, %p99
      %p101 = scmp.ne.s32.totalorder %s92, %s93
      %p102 = scmp.eq.s32.totalorder %s26, 0
      %p103 = por %p101, %p102
      %p104 = scmp.ne.s32.totalorder %s92, %s93
      %p105 = scmp.eq.s32.totalorder %s27, 3
      %p106 = por %p104, %p105
      %p108 = scmp.ne.s32.totalorder %s93, %s107
      %p109 = scmp.eq.s32.totalorder %s27, 0
      %p110 = por %p108, %p109
      %s111 = ssub.s32 %s29, %s36
      %p112 = scmp.eq.s32.totalorder %s111, 0
      %s114 = sadd.s32 %s113, 1
      %s115 = scalar_select %p112, %s113, %s114
      %p118 = pneg %p112
      %p119 = scmp.eq.s32.totalorder %s21, 3
      %p120 = por %p118, %p119
      %p121 = scmp.ne.s32.totalorder %s113, %s116
      %p122 = scmp.eq.s32.totalorder %s21, 0
      %p123 = por %p121, %p122
      %p124 = scmp.ne.s32.totalorder %s113, %s116
      %p125 = scmp.eq.s32.totalorder %s26, 3
      %p126 = por %p124, %p125
      %p127 = scmp.ne.s32.totalorder %s116, %s117
      %p128 = scmp.eq.s32.totalorder %s26, 0
      %p129 = por %p127, %p128
      %p130 = scmp.ne.s32.totalorder %s116, %s117
      %p131 = scmp.eq.s32.totalorder %s27, 3
      %p132 = por %p130, %p131
      %p134 = scmp.ne.s32.totalorder %s117, %s133
      %p135 = scmp.eq.s32.totalorder %s27, 0
      %p136 = por %p134, %p135
      %s137 = ssub.s32 %s29, %s36
      %p138 = scmp.eq.s32.totalorder %s137, 0
      %s140 = sadd.s32 %s139, 1
      %s141 = scalar_select %p138, %s139, %s140
      %p144 = pneg %p138
      %p145 = scmp.eq.s32.totalorder %s21, 3
      %p146 = por %p144, %p145
      %p147 = scmp.ne.s32.totalorder %s139, %s142
      %p148 = scmp.eq.s32.totalorder %s21, 0
      %p149 = por %p147, %p148
      %p150 = scmp.ne.s32.totalorder %s139, %s142
      %p151 = scmp.eq.s32.totalorder %s26, 3
      %p152 = por %p150, %p151
      %p153 = scmp.ne.s32.totalorder %s142, %s143
      %p154 = scmp.eq.s32.totalorder %s26, 0
      %p155 = por %p153, %p154
      %p156 = scmp.ne.s32.totalorder %s142, %s143
      %p157 = scmp.eq.s32.totalorder %s27, 3
      %p158 = por %p156, %p157
      %p160 = scmp.ne.s32.totalorder %s143, %s159
      %p161 = scmp.eq.s32.totalorder %s27, 0
      %p162 = por %p160, %p161
      %s163 = ssub.s32 %s28, %s40
      %s164 = ssub.s32 %s29, %s36
      %s165 = sor.u32 %s163, %s164
      %p166 = scmp.eq.s32.totalorder %s165, 0
      %s168 = sadd.s32 %s167, 1
      %s169 = scalar_select %p166, %s167, %s168
      %p172 = pneg %p166
      %p173 = scmp.eq.s32.totalorder %s21, 3
      %p174 = por %p172, %p173
      %p175 = scmp.ne.s32.totalorder %s167, %s170
      %p176 = scmp.eq.s32.totalorder %s21, 0
      %p177 = por %p175, %p176
      %p178 = scmp.ne.s32.totalorder %s167, %s170
      %p179 = scmp.eq.s32.totalorder %s26, 3
      %p180 = por %p178, %p179
      %p181 = scmp.ne.s32.totalorder %s170, %s171
      %p182 = scmp.eq.s32.totalorder %s26, 0
      %p183 = por %p181, %p182
      %p184 = scmp.ne.s32.totalorder %s170, %s171
      %p185 = scmp.eq.s32.totalorder %s27, 3
      %p186 = por %p184, %p185
      %p188 = scmp.ne.s32.totalorder %s171, %s187
      %p189 = scmp.eq.s32.totalorder %s27, 0
      %p190 = por %p188, %p189
      %s191 = ssub.s32 %s28, %s40
      %s192 = ssub.s32 %s29, %s36
      %s193 = sor.u32 %s191, %s192
      %p194 = scmp.eq.s32.totalorder %s193, 0
      %s196 = sadd.s32 %s195, 1
      %s197 = scalar_select %p194, %s195, %s196
      %p200 = pneg %p194
      %p201 = scmp.eq.s32.totalorder %s21, 3
      %p202 = por %p200, %p201
      %p203 = scmp.ne.s32.totalorder %s195, %s198
      %p204 = scmp.eq.s32.totalorder %s21, 0
      %p205 = por %p203, %p204
      %p206 = scmp.ne.s32.totalorder %s195, %s198
      %p207 = scmp.eq.s32.totalorder %s26, 3
      %p208 = por %p206, %p207
      %p209 = scmp.ne.s32.totalorder %s198, %s199
      %p210 = scmp.eq.s32.totalorder %s26, 0
      %p211 = por %p209, %p210
      %p212 = scmp.ne.s32.totalorder %s198, %s199
      %p213 = scmp.eq.s32.totalorder %s27, 3
      %p214 = por %p212, %p213
      %p216 = scmp.ne.s32.totalorder %s199, %s215
      %p217 = scmp.eq.s32.totalorder %s27, 0
      %p218 = por %p216, %p217
      %s219 = ssub.s32 %s28, %s40
      %s220 = ssub.s32 %s29, %s36
      %s221 = sor.u32 %s219, %s220
      %p222 = scmp.eq.s32.totalorder %s221, 0
      %s224 = sadd.s32 %s223, 1
      %s225 = scalar_select %p222, %s223, %s224
      %p228 = pneg %p222
      %p229 = scmp.eq.s32.totalorder %s21, 3
      %p230 = por %p228, %p229
      %p231 = scmp.ne.s32.totalorder %s223, %s226
      %p232 = scmp.eq.s32.totalorder %s21, 0
      %p233 = por %p231, %p232
      %p234 = scmp.ne.s32.totalorder %s223, %s226
      %p235 = scmp.eq.s32.totalorder %s26, 3
      %p236 = por %p234, %p235
      %p237 = scmp.ne.s32.totalorder %s226, %s227
      %p238 = scmp.eq.s32.totalorder %s26, 0
      %p239 = por %p237, %p238
      %p240 = scmp.ne.s32.totalorder %s226, %s227
      %p241 = scmp.eq.s32.totalorder %s27, 3
      %p242 = por %p240, %p241
      %p244 = scmp.ne.s32.totalorder %s227, %s243
      %p245 = scmp.eq.s32.totalorder %s27, 0
      %p246 = por %p244, %p245
      %p247 = scmp.le.s32.totalorder 1, %s21
      %p248 = scmp.lt.s32.totalorder %s21, 5
      %p249 = pnand %p247, %p248
      %p250 = pneg %p249
      // Predicated region
      $region9: #{tpu_custom_call.1} parent=5 // pred_check
        _
      $region10: #{tpu_custom_call.1} parent=5 // pred_check_branch
        %252 = sbr.rel (%p249) target = $region12
      $region11: #{tpu_custom_call.1} parent=5 // pred_region
        %s253 = ssub.s32 %s21, 1
        // Predicated region
        $region13: #{tpu_custom_call.1} parent=11 // pred_check
          %p254 = pneg %p82
        $region14: #{tpu_custom_call.1} parent=11 // pred_check_branch
          %256 = sbr.rel (%p254) target = $region16
        $region15: #{tpu_custom_call.1} parent=11 // pred_region
          %s258 = ssub.s32 512, 512
          %259 = vsyncadd [#allocation3], %s258
          %s260 = sshll.u32 [#allocation2], 4
          %s261 = int_to_ptr.vmem [resolvable:$true] %s260
          %266 = dma.hbm_to_vmem [thread:$0]  %s1, 512, %s261, [#allocation3], 128, 128, 8
        $region16: #{tpu_custom_call.1} parent=11 // pred_fallthru
          _
        // Predicated region
        $region17: #{tpu_custom_call.1} parent=11 // pred_check
          %p267 = pneg %p103
        $region18: #{tpu_custom_call.1} parent=11 // pred_check_branch
          %269 = sbr.rel (%p267) target = $region20
        $region19: #{tpu_custom_call.1} parent=11 // pred_region
          _
        $region20: #{tpu_custom_call.1} parent=11 // pred_fallthru
          _
      $region12: #{tpu_custom_call.1} parent=5 // pred_fallthru
        _
      %p270 = scmp.lt.s32.totalorder %s21, 4
      // Predicated region
      $region21: #{tpu_custom_call.1} parent=5 // pred_check
        %p271 = pneg %p270
      $region22: #{tpu_custom_call.1} parent=5 // pred_check_branch
        %273 = sbr.rel (%p271) target = $region24
      $region23: #{tpu_custom_call.1} parent=5 // pred_region
        // Predicated region
        $region25: #{tpu_custom_call.1} parent=23 // pred_check
          %p274 = pneg %p55
        $region26: #{tpu_custom_call.1} parent=23 // pred_check_branch
          %276 = sbr.rel (%p274) target = $region28
        $region27: #{tpu_custom_call.1} parent=23 // pred_region
          %p277 = scmp.lt.s32.totalorder %s28, 1
          %s278 = scalar_select %p277, %s28, 1
          %p279 = scmp.lt.s32.totalorder %s29, 1
          %s280 = scalar_select %p279, %s29, 1
          %s281 = smul.addr %s278, 2
          %s282 = sadd.s32 %s280, %s281
          %s283 = smul.addr %s282, 8
          %s284 = scalar_lea.vmem %s0, %s283
        $region28: #{tpu_custom_call.1} parent=23 // pred_fallthru
          _
        // Predicated region
        $region29: #{tpu_custom_call.1} parent=23 // pred_check
          %p285 = pneg %p123
        $region30: #{tpu_custom_call.1} parent=23 // pred_check_branch
          %287 = sbr.rel (%p285) target = $region32
        $region31: #{tpu_custom_call.1} parent=23 // pred_region
          %p288 = scmp.lt.s32.totalorder %s29, 1
          %s289 = scalar_select %p288, %s29, 1
          %s290 = smul.addr %s289, 8
          %s291 = scalar_lea.vmem %s3, %s290
        $region32: #{tpu_custom_call.1} parent=23 // pred_fallthru
          _
        // Predicated region
        $region33: #{tpu_custom_call.1} parent=23 // pred_check
          %p292 = pneg %p149
        $region34: #{tpu_custom_call.1} parent=23 // pred_check_branch
          %294 = sbr.rel (%p292) target = $region36
        $region35: #{tpu_custom_call.1} parent=23 // pred_region
          %p295 = scmp.lt.s32.totalorder %s29, 1
          %s296 = scalar_select %p295, %s29, 1
          %s297 = smul.addr %s296, 8
          %s298 = scalar_lea.vmem %s4, %s297
        $region36: #{tpu_custom_call.1} parent=23 // pred_fallthru
          _
      $region24: #{tpu_custom_call.1} parent=5 // pred_fallthru
        _
      %p299 = scmp.le.s32.totalorder 1, %s21
      %p300 = scmp.lt.s32.totalorder %s21, 5
      %p301 = pnand %p299, %p300
      %p302 = pneg %p301
      // Predicated region
      $region37: #{tpu_custom_call.1} parent=5 // pred_check
        _
      $region38: #{tpu_custom_call.1} parent=5 // pred_check_branch
        %304 = sbr.rel (%p301) target = $region40
      $region39: #{tpu_custom_call.1} parent=5 // pred_region
        %s305 = ssub.s32 %s21, 1
        // Predicated region
        $region41: #{tpu_custom_call.1} parent=39 // pred_check
          %p306 = pneg %p82
        $region42: #{tpu_custom_call.1} parent=39 // pred_check_branch
          %308 = sbr.rel (%p306) target = $region44
        $region43: #{tpu_custom_call.1} parent=39 // pred_region
          %309 = dma.done [#allocation3], 512
        $region44: #{tpu_custom_call.1} parent=39 // pred_fallthru
          _
        %p310 = scmp.lt.s32.totalorder %s30, 1
        %s311 = scalar_select %p310, %s30, 1
        %p312 = scmp.lt.s32.totalorder %s31, 1
        %s313 = scalar_select %p312, %s31, 1
        %s314 = smul.addr %s311, 2
        %s315 = sadd.s32 %s313, %s314
        %s316 = smul.addr %s315, 8
        %s317 = scalar_lea.vmem %s0, %s316
        %p318 = pneg %p61
        %p319 = pneg %p58
        %p320 = pneg %p82
        %p321 = pneg %p79
        %p322 = pneg %p103
        %p323 = pneg %p100
        %p324 = scmp.lt.s32.totalorder %s31, 1
        %s325 = scalar_select %p324, %s31, 1
        %s326 = smul.addr %s325, 8
        %s327 = scalar_lea.vmem %s3, %s326
        %p328 = pneg %p129
        %p329 = pneg %p126
        %p330 = scmp.lt.s32.totalorder %s31, 1
        %s331 = scalar_select %p330, %s31, 1
        %s332 = smul.addr %s331, 8
        %s333 = scalar_lea.vmem %s4, %s332
        %p334 = pneg %p155
        %p335 = pneg %p152
        %p336 = pneg %p183
        %p337 = pneg %p180
        %s338 = sand.u32 %s170, 1
        %s339 = scalar_lea.sflag [#allocation4], %s338
        %s340 = sand.u32 %s170, 1
        %s341 = smul.addr %s340, 8
        %s342 = scalar_lea.vmem [#allocation5], %s341
        %p343 = pneg %p211
        %p344 = pneg %p208
        %s345 = sand.u32 %s26, 1
        %s346 = scalar_lea.sflag [#allocation7], %s345
        %s347 = sand.u32 %s198, 1
        %s348 = smul.addr %s347, 8
        %s349 = scalar_lea.vmem [#allocation6], %s348
        %p350 = pneg %p239
        %p351 = pneg %p236
        %s352 = sand.u32 %s26, 1
        %s353 = scalar_lea.sflag [#allocation7], %s352
        %s354 = sand.u32 %s226, 1
        %s355 = smul.addr %s354, 8
        %s356 = scalar_lea.vmem [#allocation8], %s355
        %p357 = scmp.lt.s32.totalorder %s30, 1
        %s358 = scalar_select %p357, %s30, 1
        %p359 = scmp.lt.s32.totalorder %s31, 1
        %s360 = scalar_select %p359, %s31, 1
        %s361 = smul.addr %s358, 2
        %s362 = sadd.s32 %s360, %s361
        %s363 = smul.addr %s362, 8
        %s364 = scalar_lea.vmem %s0, %s363
        %p365 = scmp.lt.s32.totalorder %s31, 1
        %s366 = scalar_select %p365, %s31, 1
        %s367 = smul.addr %s366, 8
        %s368 = scalar_lea.vmem %s3, %s367
        %p369 = scmp.lt.s32.totalorder %s31, 1
        %s370 = scalar_select %p369, %s31, 1
        %s371 = smul.addr %s370, 8
        %s372 = scalar_lea.vmem %s4, %s371
        %v373 = vld [vmem:[%s364] sm:$0xff]
        %v374 = vld [vmem:[#allocation2] sm:$0xff]
        %v375 = vld [vmem:[#allocation2 + $0x8] sm:$0xff]
        %v376 = vld [vmem:[#allocation2 + $0x10] sm:$0xff]
        %v377 = vld [vmem:[#allocation2 + $0x18] sm:$0xff]
        %v378 = vld [vmem:[%s2] sm:$0x1]
        %v380 = vlaneseq
        %v381 = vshrl.u32 %v380, 7
        %v382 = vsub.s32 0, %v381
        %v383 = vrot.slane %v378, %v382
        %vm385 = vcmask 261120
        %v387 = vsel %vm385, %v373, 0
        %389 = vmatprep.subr.mxu0 0.0
        %390 = vmatpush1.msra.mxu0 %v374
        %391 = vmatprep.subr.mxu0 0.0
        %392 = vmatpush1.msra.mxu0 %v375
        %393 = vmatprep.subr.mxu0 0.0
        %394 = vmatpush1.msra.mxu0 %v376
        %395 = vmatprep.subr.mxu0 0.0
        %396 = vmatpush1.msra.mxu0 %v377
        %397 = vmatprep.subr.mxu0 0.0
        %398 = vmatpush1.msra.mxu0 0.0
        %399 = vmatprep.subr.mxu0 0.0
        %400 = vmatpush1.msra.mxu0 0.0
        %401 = vmatprep.subr.mxu0 0.0
        %402 = vmatpush1.msra.mxu0 0.0
        %403 = vmatprep.subr.mxu0 0.0
        %404 = vmatpush1.msra.mxu0 0.0
        %405 = vmatprep.subr.mxu0 0.0
        %406 = vmatpush1.msra.mxu0 0.0
        %407 = vmatprep.subr.mxu0 0.0
        %408 = vmatpush1.msra.mxu0 0.0
        %409 = vmatprep.subr.mxu0 0.0
        %410 = vmatpush1.msra.mxu0 0.0
        %411 = vmatprep.subr.mxu0 0.0
        %412 = vmatpush1.msra.mxu0 0.0
        %413 = vmatprep.subr.mxu0 0.0
        %414 = vmatpush1.msra.mxu0 0.0
        %415 = vmatprep.subr.mxu0 0.0
        %416 = vmatpush1.msra.mxu0 0.0
        %417 = vmatprep.subr.mxu0 0.0
        %418 = vmatpush1.msra.mxu0 0.0
        %419 = vmatprep.subr.mxu0 0.0
        %420 = vmatpush1.msra.mxu0 0.0
        %421 = vmatprep.subr.mxu0 0.0
        %422 = vmatpush1.msra.mxu0 0.0
        %423 = vmatprep.subr.mxu0 0.0
        %424 = vmatpush1.msra.mxu0 0.0
        %425 = vmatprep.subr.mxu0 0.0
        %426 = vmatpush1.msra.mxu0 0.0
        %427 = vmatprep.subr.mxu0 0.0
        %428 = vmatpush1.msra.mxu0 0.0
        %429 = vmatprep.subr.mxu0 0.0
        %430 = vmatpush1.msra.mxu0 0.0
        %431 = vmatprep.subr.mxu0 0.0
        %432 = vmatpush1.msra.mxu0 0.0
        %433 = vmatprep.subr.mxu0 0.0
        %434 = vmatpush1.msra.mxu0 0.0
        %435 = vmatprep.subr.mxu0 0.0
        %436 = vmatpush1.msra.mxu0 0.0
        %437 = vmatprep.subr.mxu0 0.0
        %438 = vmatpush1.msra.mxu0 0.0
        %439 = vmatprep.subr.mxu0 0.0
        %440 = vmatpush1.msra.mxu0 0.0
        %441 = vmatprep.subr.mxu0 0.0
        %442 = vmatpush1.msra.mxu0 0.0
        %443 = vmatprep.subr.mxu0 0.0
        %444 = vmatpush1.msra.mxu0 0.0
        %445 = vmatprep.subr.mxu0 0.0
        %446 = vmatpush1.msra.mxu0 0.0
        %447 = vmatprep.subr.mxu0 0.0
        %448 = vmatpush1.msra.mxu0 0.0
        %449 = vmatprep.subr.mxu0 0.0
        %450 = vmatpush1.msra.mxu0 0.0
        %451 = vmatprep.subr.mxu0 0.0
        %452 = vmatpush1.msra.mxu0 0.0
        %453 = vmatprep.mubr.f32.mxu0 0.0
        %454 = vmatmul.mubr.f32.gmra.mrb[0].mxu0 %v387
        %v455 = vpop.f32.mrb[0].mxu0
        %v456 = vadd.f32 %v383, %v455
        %v457 = vpop.f32.mrb[0].mxu0
        %458 = vdwg.mxu0
        %v459 = vld [vmem:[%s368] sm:$0xff]
        %v460 = vld [vmem:[%s372] sm:$0xff]
        %462 = vrot.lane.b32.xlu0 %v456, 64
        %v463 = vpop.permute.xlu0 %462
        %465 = vst.msk [vmem:[%s356] sm:$0xff] %vm385, %v463
        %v466 = vmul.f32 %v456, %v459
        %468 = vrot.lane.b32.xlu0 %v460, 4
        %v469 = vpop.permute.xlu0 %468
        %v471 = vmul.f32 %v456, %v469
        %473 = vrot.lane.b32.xlu0 %v471, 124
        %v474 = vpop.permute.xlu0 %473
        %v476 = vsub.f32 %v466, %v474
        %vm477 = vcmask 31744
        %478 = vst.msk [vmem:[%s342] sm:$0xff] %vm477, %v476
        %v479 = vmul.f32 %v456, %v460
        %481 = vrot.lane.b32.xlu0 %v459, 4
        %v482 = vpop.permute.xlu0 %481
        %v484 = vmul.f32 %v456, %v482
        %486 = vrot.lane.b32.xlu0 %v484, 124
        %v487 = vpop.permute.xlu0 %486
        %v489 = vadd.f32 %v479, %v487
        %491 = vrot.lane.b32.xlu0 %v489, 4
        %v492 = vpop.permute.xlu0 %491
        %vm494 = vcmask 64544
        %495 = vst.msk [vmem:[%s342] sm:$0xff] %vm494, %v492
        %496 = vrot.lane.b32.xlu0 %v459, 32
        %v497 = vpop.permute.xlu0 %496
        %v499 = vmul.f32 %v456, %v497
        %500 = vrot.lane.b32.xlu0 %v460, 36
        %v501 = vpop.permute.xlu0 %500
        %v503 = vmul.f32 %v456, %v501
        %505 = vrot.lane.b32.xlu0 %v503, 124
        %v506 = vpop.permute.xlu0 %505
        %v508 = vsub.f32 %v499, %v506
        %510 = vrot.lane.b32.xlu0 %v508, 96
        %v511 = vpop.permute.xlu0 %510
        %513 = vst.msk [vmem:[%s349] sm:$0xff] %vm477, %v511
        %514 = vrot.lane.b32.xlu0 %v460, 32
        %v515 = vpop.permute.xlu0 %514
        %v517 = vmul.f32 %v456, %v515
        %518 = vrot.lane.b32.xlu0 %v459, 36
        %v519 = vpop.permute.xlu0 %518
        %v521 = vmul.f32 %v456, %v519
        %523 = vrot.lane.b32.xlu0 %v521, 124
        %v524 = vpop.permute.xlu0 %523
        %v526 = vadd.f32 %v517, %v524
        %528 = vrot.lane.b32.xlu0 %v526, 100
        %v529 = vpop.permute.xlu0 %528
        %531 = vst.msk [vmem:[%s349] sm:$0xff] %vm494, %v529
        %532 = vrot.lane.b32.xlu0 %v459, 8
        %v533 = vpop.permute.xlu0 %532
        %v535 = vmul.f32 %v456, %v533
        %536 = vrot.lane.b32.xlu0 %v460, 12
        %v537 = vpop.permute.xlu0 %536
        %v539 = vmul.f32 %v456, %v537
        %541 = vrot.lane.b32.xlu0 %v539, 124
        %v542 = vpop.permute.xlu0 %541
        %v544 = vsub.f32 %v535, %v542
        %vm545 = vcmask 97344
        %546 = vst.msk [vmem:[%s342] sm:$0xff] %vm545, %v544
        %547 = vrot.lane.b32.xlu0 %v460, 8
        %v548 = vpop.permute.xlu0 %547
        %v550 = vmul.f32 %v456, %v548
        %551 = vrot.lane.b32.xlu0 %v459, 12
        %v552 = vpop.permute.xlu0 %551
        %v554 = vmul.f32 %v456, %v552
        %556 = vrot.lane.b32.xlu0 %v554, 124
        %v557 = vpop.permute.xlu0 %556
        %v559 = vadd.f32 %v550, %v557
        %561 = vrot.lane.b32.xlu0 %v559, 4
        %v562 = vpop.permute.xlu0 %561
        %vm564 = vcmask 130144
        %565 = vst.msk [vmem:[%s342] sm:$0xff] %vm564, %v562
        %566 = vrot.lane.b32.xlu0 %v459, 40
        %v567 = vpop.permute.xlu0 %566
        %v569 = vmul.f32 %v456, %v567
        %570 = vrot.lane.b32.xlu0 %v460, 44
        %v571 = vpop.permute.xlu0 %570
        %v573 = vmul.f32 %v456, %v571
        %575 = vrot.lane.b32.xlu0 %v573, 124
        %v576 = vpop.permute.xlu0 %575
        %v578 = vsub.f32 %v569, %v576
        %580 = vrot.lane.b32.xlu0 %v578, 96
        %v581 = vpop.permute.xlu0 %580
        %583 = vst.msk [vmem:[%s349] sm:$0xff] %vm545, %v581
        %584 = vrot.lane.b32.xlu0 %v460, 40
        %v585 = vpop.permute.xlu0 %584
        %v587 = vmul.f32 %v456, %v585
        %588 = vrot.lane.b32.xlu0 %v459, 44
        %v589 = vpop.permute.xlu0 %588
        %v591 = vmul.f32 %v456, %v589
        %593 = vrot.lane.b32.xlu0 %v591, 124
        %v594 = vpop.permute.xlu0 %593
        %v596 = vadd.f32 %v587, %v594
        %598 = vrot.lane.b32.xlu0 %v596, 100
        %v599 = vpop.permute.xlu0 %598
        %601 = vst.msk [vmem:[%s349] sm:$0xff] %vm564, %v599
        %602 = vrot.lane.b32.xlu0 %v459, 16
        %v603 = vpop.permute.xlu0 %602
        %v605 = vmul.f32 %v456, %v603
        %606 = vrot.lane.b32.xlu0 %v460, 20
        %v607 = vpop.permute.xlu0 %606
        %v609 = vmul.f32 %v456, %v607
        %611 = vrot.lane.b32.xlu0 %v609, 124
        %v612 = vpop.permute.xlu0 %611
        %v614 = vsub.f32 %v605, %v612
        %vm615 = vcmask 162944
        %616 = vst.msk [vmem:[%s342] sm:$0xff] %vm615, %v614
        %617 = vrot.lane.b32.xlu0 %v460, 16
        %v618 = vpop.permute.xlu0 %617
        %v620 = vmul.f32 %v456, %v618
        %621 = vrot.lane.b32.xlu0 %v459, 20
        %v622 = vpop.permute.xlu0 %621
        %v624 = vmul.f32 %v456, %v622
        %626 = vrot.lane.b32.xlu0 %v624, 124
        %v627 = vpop.permute.xlu0 %626
        %v629 = vadd.f32 %v620, %v627
        %631 = vrot.lane.b32.xlu0 %v629, 4
        %v632 = vpop.permute.xlu0 %631
        %vm634 = vcmask 195744
        %635 = vst.msk [vmem:[%s342] sm:$0xff] %vm634, %v632
        %636 = vrot.lane.b32.xlu0 %v459, 48
        %v637 = vpop.permute.xlu0 %636
        %v639 = vmul.f32 %v456, %v637
        %640 = vrot.lane.b32.xlu0 %v460, 52
        %v641 = vpop.permute.xlu0 %640
        %v643 = vmul.f32 %v456, %v641
        %645 = vrot.lane.b32.xlu0 %v643, 124
        %v646 = vpop.permute.xlu0 %645
        %v648 = vsub.f32 %v639, %v646
        %650 = vrot.lane.b32.xlu0 %v648, 96
        %v651 = vpop.permute.xlu0 %650
        %653 = vst.msk [vmem:[%s349] sm:$0xff] %vm615, %v651
        %654 = vrot.lane.b32.xlu0 %v460, 48
        %v655 = vpop.permute.xlu0 %654
        %v657 = vmul.f32 %v456, %v655
        %658 = vrot.lane.b32.xlu0 %v459, 52
        %v659 = vpop.permute.xlu0 %658
        %v661 = vmul.f32 %v456, %v659
        %663 = vrot.lane.b32.xlu0 %v661, 124
        %v664 = vpop.permute.xlu0 %663
        %v666 = vadd.f32 %v657, %v664
        %668 = vrot.lane.b32.xlu0 %v666, 100
        %v669 = vpop.permute.xlu0 %668
        %671 = vst.msk [vmem:[%s349] sm:$0xff] %vm634, %v669
        %672 = vrot.lane.b32.xlu0 %v459, 24
        %v673 = vpop.permute.xlu0 %672
        %v675 = vmul.f32 %v456, %v673
        %676 = vrot.lane.b32.xlu0 %v460, 28
        %v677 = vpop.permute.xlu0 %676
        %v679 = vmul.f32 %v456, %v677
        %681 = vrot.lane.b32.xlu0 %v679, 124
        %v682 = vpop.permute.xlu0 %681
        %v684 = vsub.f32 %v675, %v682
        %vm685 = vcmask 228544
        %686 = vst.msk [vmem:[%s342] sm:$0xff] %vm685, %v684
        %687 = vrot.lane.b32.xlu0 %v460, 24
        %v688 = vpop.permute.xlu0 %687
        %v690 = vmul.f32 %v456, %v688
        %691 = vrot.lane.b32.xlu0 %v459, 28
        %v692 = vpop.permute.xlu0 %691
        %v694 = vmul.f32 %v456, %v692
        %696 = vrot.lane.b32.xlu0 %v694, 124
        %v697 = vpop.permute.xlu0 %696
        %v699 = vadd.f32 %v690, %v697
        %701 = vrot.lane.b32.xlu0 %v699, 4
        %v702 = vpop.permute.xlu0 %701
        %vm704 = vcmask 261344
        %705 = vst.msk [vmem:[%s342] sm:$0xff] %vm704, %v702
        %706 = vrot.lane.b32.xlu0 %v459, 56
        %v707 = vpop.permute.xlu0 %706
        %v709 = vmul.f32 %v456, %v707
        %710 = vrot.lane.b32.xlu0 %v460, 60
        %v711 = vpop.permute.xlu0 %710
        %v713 = vmul.f32 %v456, %v711
        %715 = vrot.lane.b32.xlu0 %v713, 124
        %v716 = vpop.permute.xlu0 %715
        %v718 = vsub.f32 %v709, %v716
        %720 = vrot.lane.b32.xlu0 %v718, 96
        %v721 = vpop.permute.xlu0 %720
        %723 = vst.msk [vmem:[%s349] sm:$0xff] %vm685, %v721
        %724 = vrot.lane.b32.xlu0 %v460, 56
        %v725 = vpop.permute.xlu0 %724
        %v727 = vmul.f32 %v456, %v725
        %728 = vrot.lane.b32.xlu0 %v459, 60
        %v729 = vpop.permute.xlu0 %728
        %v731 = vmul.f32 %v456, %v729
        %733 = vrot.lane.b32.xlu0 %v731, 124
        %v734 = vpop.permute.xlu0 %733
        %v736 = vadd.f32 %v727, %v734
        %738 = vrot.lane.b32.xlu0 %v736, 100
        %v739 = vpop.permute.xlu0 %738
        %741 = vst.msk [vmem:[%s349] sm:$0xff] %vm704, %v739
        %s742 = sand.u32 %s170, 1
        %s743 = scalar_lea.sflag [#allocation4], %s742
        %s744 = sand.u32 %s170, 1
        %s745 = smul.addr %s744, 8
        %s746 = scalar_lea.vmem [#allocation5], %s745
        %s747 = sand.u32 %s26, 1
        %s748 = scalar_lea.sflag [#allocation7], %s747
        %s749 = sand.u32 %s198, 1
        %s750 = smul.addr %s749, 8
        %s751 = scalar_lea.vmem [#allocation6], %s750
        %s752 = sand.u32 %s26, 1
        %s753 = scalar_lea.sflag [#allocation7], %s752
        %s754 = sand.u32 %s226, 1
        %s755 = smul.addr %s754, 8
        %s756 = scalar_lea.vmem [#allocation8], %s755
        // Predicated region
        $region45: #{tpu_custom_call.1} parent=39 // pred_check
          %p757 = pneg %p180
        $region46: #{tpu_custom_call.1} parent=39 // pred_check_branch
          %759 = sbr.rel (%p757) target = $region48
        $region47: #{tpu_custom_call.1} parent=39 // pred_region
          %s761 = ssub.s32 128, 128
          %762 = vsyncadd %s743, %s761
          %s763 = smul.addr %s30, 2
          %s764 = sadd.s32 %s31, %s763
          %s765 = smul.addr %s764, 128
          %s766 = scalar_lea.hbm %s5, %s765
          %s768 = sshll.u32 %s746, 4
          %s769 = int_to_ptr.vmem [resolvable:$true] %s768
          %771 = dma.vmem_to_hbm [thread:$0]  %s769, 128, %s766, %s743
        $region48: #{tpu_custom_call.1} parent=39 // pred_fallthru
          _
        // Predicated region
        $region49: #{tpu_custom_call.1} parent=39 // pred_check
          %p772 = pneg %p208
        $region50: #{tpu_custom_call.1} parent=39 // pred_check_branch
          %774 = sbr.rel (%p772) target = $region52
        $region51: #{tpu_custom_call.1} parent=39 // pred_region
          %s776 = ssub.s32 128, 128
          %777 = vsyncadd %s748, %s776
          %s778 = smul.addr %s30, 2
          %s779 = sadd.s32 %s31, %s778
          %s780 = smul.addr %s779, 128
          %s781 = scalar_lea.hbm %s6, %s780
          %s783 = sshll.u32 %s751, 4
          %s784 = int_to_ptr.vmem [resolvable:$true] %s783
          %786 = dma.vmem_to_hbm [thread:$0]  %s784, 128, %s781, %s748
        $region52: #{tpu_custom_call.1} parent=39 // pred_fallthru
          _
        // Predicated region
        $region53: #{tpu_custom_call.1} parent=39 // pred_check
          %p787 = pneg %p236
        $region54: #{tpu_custom_call.1} parent=39 // pred_check_branch
          %789 = sbr.rel (%p787) target = $region56
        $region55: #{tpu_custom_call.1} parent=39 // pred_region
          %s791 = ssub.s32 128, 128
          %792 = vsyncadd %s753, %s791
          %s793 = smul.addr %s30, 2
          %s794 = sadd.s32 %s31, %s793
          %s795 = smul.addr %s794, 128
          %s796 = scalar_lea.hbm %s7, %s795
          %s798 = sshll.u32 %s756, 4
          %s799 = int_to_ptr.vmem [resolvable:$true] %s798
          %801 = dma.vmem_to_hbm [thread:$0]  %s799, 128, %s796, %s753
        $region56: #{tpu_custom_call.1} parent=39 // pred_fallthru
          _
      $region40: #{tpu_custom_call.1} parent=5 // pred_fallthru
        _
      %p802 = scmp.le.s32.totalorder 2, %s21
      // Predicated region
      $region57: #{tpu_custom_call.1} parent=5 // pred_check
        %p803 = pneg %p802
      $region58: #{tpu_custom_call.1} parent=5 // pred_check_branch
        %805 = sbr.rel (%p803) target = $region60
      $region59: #{tpu_custom_call.1} parent=5 // pred_region
        %s806 = ssub.s32 %s21, 2
        // Predicated region
        $region61: #{tpu_custom_call.1} parent=59 // pred_check
          %p807 = pneg %p186
        $region62: #{tpu_custom_call.1} parent=59 // pred_check_branch
          %809 = sbr.rel (%p807) target = $region64
        $region63: #{tpu_custom_call.1} parent=59 // pred_region
          %s810 = sand.u32 %s171, 1
          %s811 = scalar_lea.sflag [#allocation4], %s810
          %s812 = sand.u32 %s171, 1
          %s813 = smul.addr %s812, 8
          %s814 = scalar_lea.vmem [#allocation5], %s813
          %815 = dma.done %s811, 128
        $region64: #{tpu_custom_call.1} parent=59 // pred_fallthru
          _
        // Predicated region
        $region65: #{tpu_custom_call.1} parent=59 // pred_check
          %p816 = pneg %p214
        $region66: #{tpu_custom_call.1} parent=59 // pred_check_branch
          %818 = sbr.rel (%p816) target = $region68
        $region67: #{tpu_custom_call.1} parent=59 // pred_region
          %s819 = sand.u32 %s27, 1
          %s820 = scalar_lea.sflag [#allocation7], %s819
          %s821 = sand.u32 %s199, 1
          %s822 = smul.addr %s821, 8
          %s823 = scalar_lea.vmem [#allocation6], %s822
          %824 = dma.done %s820, 128
        $region68: #{tpu_custom_call.1} parent=59 // pred_fallthru
          _
        // Predicated region
        $region69: #{tpu_custom_call.1} parent=59 // pred_check
          %p825 = pneg %p242
        $region70: #{tpu_custom_call.1} parent=59 // pred_check_branch
          %827 = sbr.rel (%p825) target = $region72
        $region71: #{tpu_custom_call.1} parent=59 // pred_region
          %s828 = sand.u32 %s27, 1
          %s829 = scalar_lea.sflag [#allocation7], %s828
          %s830 = sand.u32 %s227, 1
          %s831 = smul.addr %s830, 8
          %s832 = scalar_lea.vmem [#allocation8], %s831
          %833 = dma.done %s829, 128
        $region72: #{tpu_custom_call.1} parent=59 // pred_fallthru
          _
      $region60: #{tpu_custom_call.1} parent=5 // pred_fallthru
        _
    $region6: #{tpu_custom_call.1} parent=1 // loop_footer
      %s25 = sadd.s32 1, %s21
    $region7: #{tpu_custom_call.1} parent=1 // loop_footer_branch
      %20 = sbr.rel target = $region3
    $region8: #{tpu_custom_call.1} parent=1 // loop_exit
      _
    %834 = vsyncpa [#allocation3], 1
    %s835 = scalar_lea.sflag [#allocation3], 1
    %836 = vsyncpa %s835, 1
    %837 = vsyncpa [#allocation4], 1
    %s838 = scalar_lea.sflag [#allocation4], 1
    %839 = vsyncpa %s838, 1
    %840 = vsyncpa [#allocation7], 1
    %s841 = scalar_lea.sflag [#allocation7], 1
    %842 = vsyncpa %s841, 1

</llo_original>
